<compile_context>
chip_gen: v5e
topology: v5e:2x2
jax: 0.10.0
libtpu: 0.0.40
codegen_flags: <defaults>
</compile_context>

<pallas_src>
import functools
import math

import jax
import jax.numpy as jnp
from jax.experimental import pallas as pl
from jax.experimental.pallas import tpu as pltpu

# -log(clamp_min) with clamp_min = 1e-4 (constant-folded out of the kernel).
_NEG_LOG_CLAMP = -math.log(1e-4)  # 9.210340371976184


def _rce_loss_kernel(pred_ref, labels_ref, out_ref, *, block_n, total_n):
    i = pl.program_id(0)

    # Accepts f32 or bf16 pred; compute stays f32 (v5e has no bf16 VPU/EUP).
    pred = pred_ref[...].astype(jnp.float32)   # (C, TN): classes on sublanes
    labels = labels_ref[...]                   # (1, TN) int32
    c, tn = pred.shape

    # Softmax over the class (sublane) axis -- cheap 6-term sublane reduction.
    m = jnp.max(pred, axis=0, keepdims=True)                  # (1, TN)
    e = jnp.exp(pred - m)                                     # (C, TN), EUP
    denom = jnp.sum(e, axis=0, keepdims=True)                 # (1, TN)
    inv = pl.reciprocal(denom, approx=False)                  # 1 recip / column
    p = e * inv                                               # (C, TN), VPU
    # softmax output is <= 1 (modulo a ULP), so only the lower clamp matters.
    p = jnp.maximum(p, 0.0001)

    # Closed form of -sum_c p_c * log(clamp(one_hot_c)):
    #   log(one_hot) is 0 at the true class and log(1e-4) elsewhere, so
    #   loss_col = -log(1e-4) * (sum_c p_c - p_true).
    class_iota = jax.lax.broadcasted_iota(jnp.int32, (c, tn), 0)
    is_label = class_iota == labels                           # broadcast (1,TN)
    p_sum = jnp.sum(p, axis=0, keepdims=True)                 # (1, TN)
    p_true = jnp.sum(jnp.where(is_label, p, 0.0), axis=0, keepdims=True)
    loss_col = _NEG_LOG_CLAMP * (p_sum - p_true)              # (1, TN)

    # Mask padded / out-of-bounds columns of the ragged last block.  Must be
    # applied BEFORE the block sum: garbage columns may hold Inf/NaN.
    col = jax.lax.broadcasted_iota(jnp.int32, (1, tn), 1) + i * block_n
    loss_col = jnp.where(col < total_n, loss_col, 0.0)

    partial = jnp.sum(loss_col)                               # scalar partial

    # Write the partial at lane 0 of this block's own (1, 128) output tile.
    lane = jax.lax.broadcasted_iota(jnp.int32, (1, 128), 1)
    out_ref[...] = jnp.where(lane == 0, partial, 0.0).astype(out_ref.dtype)


def _round_up(x, m):
    return (x + m - 1) // m * m


def rce_loss(pred, labels, num_classes=6, scale=1.0, block_n=65536):
    """pred: (N, C) float, labels: (N,) int. Returns scalar f32 loss."""
    n, c = pred.shape
    assert c == num_classes

    # Lane-dense layout: classes on sublanes, batch on the 128-lane axis.
    # allow_input_fusion below lets XLA fuse these reshapes into the kernel's
    # input fetch rather than materializing (C, N) in HBM.
    # TODO(synk): have the producer emit (C, N) (bf16 if accuracy allows) and
    # drop this transpose for the full ~2.5x HBM-traffic win.
    pred_t = jnp.transpose(pred)                          # (C, N), keeps dtype
    labels_row = labels.astype(jnp.int32).reshape(1, n)   # (1, N)

    # Tile width: multiple of 128 lanes, capped at block_n.  No padding --
    # the ragged last block is masked inside the kernel.
    tn = min(block_n, _round_up(n, 128))
    tn = _round_up(tn, 128)
    g = pl.cdiv(n, tn)

    kernel = functools.partial(_rce_loss_kernel, block_n=tn, total_n=n)

    bytes_in = pred.size * pred.dtype.itemsize + n * 4
    partials = pl.pallas_call(
        kernel,
        out_shape=jax.ShapeDtypeStruct((1, g * 128), jnp.float32),
        grid=(g,),
        in_specs=[
            pl.BlockSpec((c, tn), lambda i: (0, i)),   # pred block (C, TN)
            pl.BlockSpec((1, tn), lambda i: (0, i)),   # labels block (1, TN)
        ],
        out_specs=pl.BlockSpec((1, 128), lambda i: (0, i)),
        compiler_params=pltpu.CompilerParams(
            dimension_semantics=("parallel",),
            vmem_limit_bytes=48 * 1024 * 1024,
            allow_input_fusion=[True, True],
        ),
        cost_estimate=pl.CostEstimate(
            flops=12 * n * c,
            transcendentals=n * c,
            bytes_accessed=bytes_in + g * 128 * 4,
        ),
    )(pred_t, labels_row)

    # Final reduction over per-block partials; mean over the TRUE batch size.
    return (scale * jnp.sum(partials) / n).astype(jnp.float32)


def _reference(pred, labels, num_classes=6, scale=1.0):
    p = jax.nn.softmax(pred.astype(jnp.float32), axis=1)
    p = jnp.clip(p, 0.0001, 1.0)
    oh = jax.nn.one_hot(labels, num_classes, dtype=jnp.float32)
    oh = jnp.clip(oh, 0.0001, 1.0)
    loss = -jnp.sum(p * jnp.log(oh), axis=1)
    return scale * jnp.mean(loss)


if __name__ == "__main__":
    key = jax.random.PRNGKey(0)
    num_classes = 6

    # Small case (single block, batch of 8 inside a 128-lane tile).
    k1, k2, k3, k4 = jax.random.split(key, 4)
    batch = 8
    pred = jax.random.normal(k1, (batch, num_classes), dtype=jnp.float32)
    labels = jax.random.randint(k2, (batch,), 0, num_classes, dtype=jnp.int32)

    out = rce_loss(pred, labels, num_classes=num_classes, scale=1.0)
    out = jax.block_until_ready(out)
    ref = _reference(pred, labels, num_classes=num_classes, scale=1.0)
    assert jnp.allclose(out, ref, rtol=1e-5, atol=1e-5), (out, ref)

    # Multi-block case: exercises the grid, the parallel per-block outputs and
    # the unpadded ragged last block (300 = 2*128 + 44).
    batch2 = 300
    pred2 = jax.random.normal(k3, (batch2, num_classes), dtype=jnp.float32)
    labels2 = jax.random.randint(k4, (batch2,), 0, num_classes, dtype=jnp.int32)

    out2 = rce_loss(pred2, labels2, num_classes=num_classes, scale=2.5,
                    block_n=128)
    out2 = jax.block_until_ready(out2)
    ref2 = _reference(pred2, labels2, num_classes=num_classes, scale=2.5)
    assert jnp.allclose(out2, ref2, rtol=1e-5, atol=1e-5), (out2, ref2)

    print("KERNEL_OK")
</pallas_src>

<mosaic_0001>
module attributes {stable_mosaic.version = 11 : i64} {
  func.func @_rce_loss_kernel(%arg0: i32, %arg1: memref<6x128xf32, #tpu.memory_space<vmem>>, %arg2: memref<1x128xi32, #tpu.memory_space<vmem>>, %arg3: memref<1x128xf32, #tpu.memory_space<vmem>>) attributes {dimension_semantics = [#tpu.dimension_semantics<parallel>], iteration_bounds = array<i64: 1>, scalar_prefetch = 0 : i64, scratch_operands = 0 : i64, tpu.core_type = #tpu.core_type<tc>, window_params = [{transform_indices = @transform_0, window_bounds = array<i64: 6, 128>}, {transform_indices = @transform_1, window_bounds = array<i64: 1, 128>}, {transform_indices = @transform_2, window_bounds = array<i64: 1, 128>}]} {
    %c0 = arith.constant 0 : index
    %c0_0 = arith.constant 0 : index
    %0 = vector.load %arg1[%c0, %c0_0] : memref<6x128xf32, #tpu.memory_space<vmem>>, vector<6x128xf32>
    %c0_1 = arith.constant 0 : index
    %c0_2 = arith.constant 0 : index
    %1 = vector.load %arg2[%c0_1, %c0_2] : memref<1x128xi32, #tpu.memory_space<vmem>>, vector<1x128xi32>
    %cst = arith.constant dense<0xFF800000> : vector<128xf32>
    %2 = vector.multi_reduction <maximumf>, %0, %cst [0] : vector<6x128xf32> to vector<128xf32>
    %3 = vector.shape_cast %2 : vector<128xf32> to vector<1x128xf32>
    %4 = vector.broadcast %3 : vector<1x128xf32> to vector<6x128xf32>
    %5 = arith.subf %0, %4 : vector<6x128xf32>
    %6 = math.exp %5 : vector<6x128xf32>
    %cst_3 = arith.constant dense<0.000000e+00> : vector<128xf32>
    %7 = vector.multi_reduction <add>, %6, %cst_3 [0] : vector<6x128xf32> to vector<128xf32>
    %8 = vector.shape_cast %7 : vector<128xf32> to vector<1x128xf32>
    %9 = tpu.reciprocal %8 : vector<1x128xf32> -> vector<1x128xf32>
    %10 = vector.broadcast %9 : vector<1x128xf32> to vector<6x128xf32>
    %11 = arith.mulf %6, %10 : vector<6x128xf32>
    %cst_4 = arith.constant 9.99999974E-5 : f32
    %12 = vector.broadcast %cst_4 : f32 to vector<6x128xf32>
    %13 = arith.maximumf %11, %12 : vector<6x128xf32>
    %14 = tpu.iota {dimensions = array<i32: 0>} : vector<6x128xi32>
    %15 = vector.broadcast %1 : vector<1x128xi32> to vector<6x128xi32>
    %16 = arith.cmpi eq, %14, %15 : vector<6x128xi32>
    %cst_5 = arith.constant dense<0.000000e+00> : vector<128xf32>
    %17 = vector.multi_reduction <add>, %13, %cst_5 [0] : vector<6x128xf32> to vector<128xf32>
    %18 = vector.shape_cast %17 : vector<128xf32> to vector<1x128xf32>
    %cst_6 = arith.constant 0.000000e+00 : f32
    %19 = vector.broadcast %cst_6 : f32 to vector<6x128xf32>
    %20 = arith.select %16, %13, %19 : vector<6x128xi1>, vector<6x128xf32>
    %cst_7 = arith.constant dense<0.000000e+00> : vector<128xf32>
    %21 = vector.multi_reduction <add>, %20, %cst_7 [0] : vector<6x128xf32> to vector<128xf32>
    %22 = vector.shape_cast %21 : vector<128xf32> to vector<1x128xf32>
    %23 = arith.subf %18, %22 : vector<1x128xf32>
    %cst_8 = arith.constant 9.21034049 : f32
    %24 = vector.broadcast %cst_8 : f32 to vector<1x128xf32>
    %25 = arith.mulf %24, %23 : vector<1x128xf32>
    %26 = tpu.iota {dimensions = array<i32: 1>} : vector<1x128xi32>
    %c128_i32 = arith.constant 128 : i32
    %27 = arith.muli %arg0, %c128_i32 : i32
    %28 = vector.broadcast %27 : i32 to vector<1x128xi32>
    %29 = arith.addi %26, %28 : vector<1x128xi32>
    %c8_i32 = arith.constant 8 : i32
    %30 = vector.broadcast %c8_i32 : i32 to vector<1x128xi32>
    %31 = arith.cmpi slt, %29, %30 : vector<1x128xi32>
    %cst_9 = arith.constant 0.000000e+00 : f32
    %32 = vector.broadcast %cst_9 : f32 to vector<1x128xf32>
    %33 = arith.select %31, %25, %32 : vector<1x128xi1>, vector<1x128xf32>
    %34 = vector.shape_cast %33 : vector<1x128xf32> to vector<1x1x128xf32>
    %cst_10 = arith.constant dense<0.000000e+00> : vector<1xf32>
    %35 = vector.multi_reduction <add>, %34, %cst_10 [1, 2] : vector<1x1x128xf32> to vector<1xf32>
    %36 = vector.shape_cast %35 : vector<1xf32> to vector<1x1x1xf32>
    %37 = vector.extract %36[0, 0, 0] : f32 from vector<1x1x1xf32>
    %38 = tpu.iota {dimensions = array<i32: 1>} : vector<1x128xi32>
    %c0_i32 = arith.constant 0 : i32
    %39 = vector.broadcast %c0_i32 : i32 to vector<1x128xi32>
    %40 = arith.cmpi eq, %38, %39 : vector<1x128xi32>
    %cst_11 = arith.constant 0.000000e+00 : f32
    %41 = vector.broadcast %37 : f32 to vector<1x128xf32>
    %42 = vector.broadcast %cst_11 : f32 to vector<1x128xf32>
    %43 = arith.select %40, %41, %42 : vector<1x128xi1>, vector<1x128xf32>
    %c0_12 = arith.constant 0 : index
    %c0_13 = arith.constant 0 : index
    %44 = vector.load %arg3[%c0_12, %c0_13] : memref<1x128xf32, #tpu.memory_space<vmem>>, vector<1x128xf32>
    tpu.vector_store %arg3[%c0_12, %c0_13], %43 {strides = array<i32>} : memref<1x128xf32, #tpu.memory_space<vmem>>, vector<1x128xf32>,
    return
  }
  func.func @transform_0(%arg0: i32) -> (i32, i32) {
    %c0_i32 = arith.constant 0 : i32
    %c0_i32_0 = arith.constant 0 : i32
    return %c0_i32, %arg0 : i32, i32
  }
  func.func @transform_1(%arg0: i32) -> (i32, i32) {
    %c0_i32 = arith.constant 0 : i32
    %c0_i32_0 = arith.constant 0 : i32
    return %c0_i32, %arg0 : i32, i32
  }
  func.func @transform_2(%arg0: i32) -> (i32, i32) {
    %c0_i32 = arith.constant 0 : i32
    %c0_i32_0 = arith.constant 0 : i32
    return %c0_i32, %arg0 : i32, i32
  }
}

</mosaic_0001>

<llo_original>
// kernel: tpu_custom_call.1
$region0: #{tpu_custom_call.1}
  #allocation0 [shape = 'u32[]', space=smem, size = 0x4, offset = 0x4, fixed_abs, tag = 'smem constant byte address 0x4 - core index']
  #allocation1 [shape = 'u32[72,128]{1,0:T(1,128)}', space=vmem, size = 0x9000, scoped, tag = 'internal scratch']
  %s0 = inlined_call_operand.hbm [shape: f32[6,8], index: 0, kind: input, shape index: {}]
  %s1 = inlined_call_operand.hbm [shape: s32[1,8], index: 1, kind: input, shape index: {}]
  %s2 = inlined_call_operand.hbm [shape: f32[1,128], index: 2, kind: output, shape index: {}]
  %s3 = sld [smem:[#allocation0]]
  $region26: #{tpu_custom_call.1} parent=0
    _
  %s5 = ssub.s32 1, %s3
  %s6 = scalar_select 0, %s5, %s3
  $region1: #{tpu_custom_call.1} parent=0
    #allocation2 [shape = 'u8[4096]{0}', space=vmem, size = 0x1000, scoped, tag = 'input window, operand 0, single buffered']
    #allocation3 [shape = 's32[1]{0}', space=sflag, size = 0x4, scoped, tag = 'scoped memory for tpu_custom_call.1']
    #allocation4 [shape = 's32[1]{0}', space=sflag, size = 0x4, scoped, tag = 'scoped memory for tpu_custom_call.1']
    #allocation5 [shape = 'u8[512]{0}', space=vmem, size = 0x400, scoped, tag = 'input window, operand 1, single buffered']
    #allocation6 [shape = 's32[1]{0}', space=sflag, size = 0x4, scoped, tag = 'scoped memory for tpu_custom_call.1']
    #allocation7 [shape = 'u8[512]{0}', space=vmem, size = 0x400, scoped, tag = 'output window, operand 0, single buffered']
    %7 = vsyncpa [#allocation3], 0
    %8 = vsyncpa [#allocation6], 0
    %9 = vsyncpa [#allocation4], 0
    // Predicated region
    $region2: #{tpu_custom_call.1} parent=1 // pred_check
      _
    $region3: #{tpu_custom_call.1} parent=1 // pred_check_branch
      %11 = sbr.rel (0) target = $region5
    $region4: #{tpu_custom_call.1} parent=1 // pred_region
      %13 = vsyncadd [#allocation3], 0
      %s15 = sshll.u32 %s0, 4
      %s16 = int_to_ptr.hbm [resolvable:$true] %s15
      %s17 = sshll.u32 [#allocation2], 4
      %s18 = int_to_ptr.vmem [resolvable:$true] %s17
      %20 = dma.hbm_to_vmem [thread:$0]  %s16, 128, %s18, [#allocation3]
    $region5: #{tpu_custom_call.1} parent=1 // pred_fallthru
      _
    // Predicated region
    $region6: #{tpu_custom_call.1} parent=1 // pred_check
      _
    $region7: #{tpu_custom_call.1} parent=1 // pred_check_branch
      %22 = sbr.rel (0) target = $region9
    $region8: #{tpu_custom_call.1} parent=1 // pred_region
      %24 = vsyncadd [#allocation6], 0
      %s26 = sshll.u32 %s1, 4
      %s27 = int_to_ptr.hbm [resolvable:$true] %s26
      %s28 = sshll.u32 [#allocation5], 4
      %s29 = int_to_ptr.vmem [resolvable:$true] %s28
      %31 = dma.hbm_to_vmem [thread:$0]  %s27, 16, %s29, [#allocation6]
    $region9: #{tpu_custom_call.1} parent=1 // pred_fallthru
      _
    // Predicated region
    $region10: #{tpu_custom_call.1} parent=1 // pred_check
      _
    $region11: #{tpu_custom_call.1} parent=1 // pred_check_branch
      %33 = sbr.rel (0) target = $region13
    $region12: #{tpu_custom_call.1} parent=1 // pred_region
      %35 = dma.done [#allocation3], 128
    $region13: #{tpu_custom_call.1} parent=1 // pred_fallthru
      _
    // Predicated region
    $region14: #{tpu_custom_call.1} parent=1 // pred_check
      _
    $region15: #{tpu_custom_call.1} parent=1 // pred_check_branch
      %37 = sbr.rel (0) target = $region17
    $region16: #{tpu_custom_call.1} parent=1 // pred_region
      %39 = dma.done [#allocation6], 16
    $region17: #{tpu_custom_call.1} parent=1 // pred_fallthru
      _
    %v40 = vld [vmem:[#allocation2] sm:$0x3f]
    %v41 = vld [vmem:[#allocation5] sm:$0x1]
    %vm42 = vcmask 1045504
    %v43 = vsel %vm42, %v40, -inf
    %v44 = vrot.slane %v43, 4
    %v45 = vmax.f32 %v43, %v44
    %v46 = vrot.slane %v45, 2
    %v47 = vmax.f32 %v45, %v46
    %v48 = vrot.slane %v47, 1
    %v49 = vmax.f32 %v47, %v48
    %v50 = vsub.f32 %v40, %v49
    %v51 = vmul.f32 %v50, 1.442695
    %v52 = vpow.pop %v51
    %v53 = vsel %vm42, %v52, 0.0
    %v54 = vrot.slane %v53, 4
    %v55 = vadd.f32 %v53, %v54
    %v56 = vrot.slane %v55, 2
    %v57 = vadd.f32 %v55, %v56
    %v58 = vrot.slane %v57, 1
    %v59 = vadd.f32 %v57, %v58
    %v60 = vrcp.pop %v59
    %v61 = vmul.f32 %v59, %v60
    %v62 = vsub.f32 1.0, %v61
    %v63 = vmul.f32 %v60, %v62
    %v64 = vadd.f32 %v60, %v63
    %vm65 = vweird.f32 %v59
    %vm66 = vweird.f32 %v60
    %vm67 = vmor %vm65, %vm66
    %v68 = vsel %vm67, %v60, %v64
    %v69 = vand.u32 2147483647, %v59
    %vm70 = vcmp.eq.f32.partialorder %v69, 8.507059e+37
    %v71 = vand.u32 %v59, 2147483648
    %v72 = vor.u32 1.1754944e-38, %v71
    %v73 = vsel %vm70, %v72, %v68
    %v74 = vmul.f32 %v52, %v73
    %v75 = vmax.f32 %v74, 0.0001
    %v76 = vlaneseq
    %v77 = vshrl.u32 %v76, 7
    %v78 = vperm.slane %v41, 0
    %vm79 = vcmp.eq.s32.totalorder %v77, %v78
    %v80 = vsel %vm42, %v75, 0.0
    %v81 = vrot.slane %v80, 4
    %v82 = vadd.f32 %v80, %v81
    %v83 = vrot.slane %v82, 2
    %v84 = vadd.f32 %v82, %v83
    %v85 = vrot.slane %v84, 1
    %v86 = vadd.f32 %v84, %v85
    %v87 = vsel %vm79, %v75, 0.0
    %v88 = vsel %vm42, %v87, 0.0
    %v89 = vrot.slane %v88, 4
    %v90 = vadd.f32 %v88, %v89
    %v91 = vrot.slane %v90, 2
    %v92 = vadd.f32 %v90, %v91
    %v93 = vrot.slane %v92, 1
    %v94 = vadd.f32 %v92, %v93
    %v95 = vsub.f32 %v86, %v94
    %v96 = vmul.f32 %v95, 9.2103405
    %v97 = vlaneseq
    %v98 = vand.u32 %v97, 127
    %s99 = smul.u32 0, 128
    %v100 = vstv %s99
    %v101 = vadd.s32 %v98, %v100
    %vm102 = vcmp.lt.s32.totalorder %v101, 8
    %v103 = vsel %vm102, %v96, 0.0
    %vm104 = vcmask 1040384
    %v105 = vsel %vm104, %v103, 0.0
    %106 = vadd.xlane.f32.xlu0 %v105
    %v107 = vpop.xlane.xlu0 %106
    %v108 = vrot.slane %v107, 4
    %v109 = vadd.f32 %v107, %v108
    %v110 = vrot.slane %v109, 2
    %v111 = vadd.f32 %v109, %v110
    %v112 = vrot.slane %v111, 1
    %v113 = vadd.f32 %v111, %v112
    %s114 = vtos %v113
    %vm115 = vcmp.eq.s32.totalorder %v98, 0
    %v116 = vstv %s114
    %v117 = vsel %vm115, %v116, 0.0
    %118 = vst [vmem:[#allocation7] sm:$0x1] %v117
    // Predicated region
    $region18: #{tpu_custom_call.1} parent=1 // pred_check
      _
    $region19: #{tpu_custom_call.1} parent=1 // pred_check_branch
      %120 = sbr.rel (0) target = $region21
    $region20: #{tpu_custom_call.1} parent=1 // pred_region
      %122 = vsyncadd [#allocation4], 0
      %s124 = sshll.u32 [#allocation7], 4
      %s125 = int_to_ptr.vmem [resolvable:$true] %s124
      %s126 = sshll.u32 %s2, 4
      %s127 = int_to_ptr.hbm [resolvable:$true] %s126
      %129 = dma.vmem_to_hbm [thread:$0]  %s125, 16, %s127, [#allocation4]
    $region21: #{tpu_custom_call.1} parent=1 // pred_fallthru
      _
    // Predicated region
    $region22: #{tpu_custom_call.1} parent=1 // pred_check
      _
    $region23: #{tpu_custom_call.1} parent=1 // pred_check_branch
      %131 = sbr.rel (0) target = $region25
    $region24: #{tpu_custom_call.1} parent=1 // pred_region
      %133 = dma.done [#allocation4], 16
    $region25: #{tpu_custom_call.1} parent=1 // pred_fallthru
      _
    %134 = vsyncpa [#allocation3], 1
    %135 = vsyncpa [#allocation6], 1
    %136 = vsyncpa [#allocation4], 1

</llo_original>
